<compile_context>
chip_gen: v7x
topology: tpu7x:2x2x1
jax: 0.10.0
libtpu: 0.0.40
codegen_flags: <defaults>
</compile_context>

<pallas_src>
import functools

import jax
import jax.numpy as jnp
from jax.experimental import pallas as pl
from jax.experimental.pallas import tpu as pltpu


def _round_up(n, m):
    return ((n + m - 1) // m) * m


# ----------------------------- kernel -------------------------------------
def _freq_feature_kernel(x_ref, basis_ref, rpw_ref, rmean_ref, m_ref,
                         w1_ref, b1_ref, w2_ref, b2_ref, out_ref):
    # Single stacked DFT matmul: rows [cos | -sin] of the (padded) rfft basis.
    xrxi = jnp.dot(basis_ref[...], x_ref[...],
                   preferred_element_type=jnp.float32)        # (2*F_pad, L)
    f_pad = basis_ref.shape[0] // 2
    xr = xrxi[:f_pad, :]                                      # (F_pad, L)
    xi = xrxi[f_pad:, :]                                      # (F_pad, L)

    power = xr * xr + xi * xi                                 # |X|^2
    pe = power + 1e-12
    inv = jax.lax.rsqrt(pe)                                   # EUP rsqrt (free slot)
    mag = pe * inv                                            # |X|
    phase = xi * inv                                          # sin(angle(X)) proxy

    # Frequency-axis means as matmuls (MXU, not XLU sublane reduce).
    pw = jnp.dot(rpw_ref[...], power,
                 preferred_element_type=jnp.float32)          # (1, L)
    phco = jnp.dot(rmean_ref[...],
                   jnp.concatenate([phase, mag], axis=-1),
                   preferred_element_type=jnp.float32)        # (1, 2L) = [ph | co]
    s = jnp.concatenate([pw, phco], axis=-1)                  # (1, 3L)

    # Batch expansion via a 0/1 mask: replaces the kron block-diagonal weights.
    # masked[b, l] = s[l] iff lane l belongs to batch b  ->  batch on sublanes.
    masked = s * m_ref[...]                                   # (tile_b, 3L)

    # Three spectral-net Linears + ReLU as one matmul against tiny dense weights.
    hidden = jnp.maximum(
        jnp.dot(masked, w1_ref[...], preferred_element_type=jnp.float32)
        + b1_ref[...], 0.0)                                   # (tile_b, 3H)

    # Fusion Linear + ReLU (Dropout == identity in eval).
    fused = jnp.dot(hidden, w2_ref[...],
                    preferred_element_type=jnp.float32) + b2_ref[...]
    out_ref[...] = jnp.maximum(fused, 0.0)                    # (tile_b, out)


# ----------------------------- tiling heuristic ----------------------------
def _choose_tile_b(B, C):
    """Lane width tile_b*C a multiple of 128 when possible; prefer >=2 grid
    blocks (keeps both v7x TCs busy; ~free overhead on single-TC v5e/v6e)."""
    if C > 0 and 128 % C == 0:
        step = 128 // C
        cands = [tb for tb in range(step, B + 1, step) if B % tb == 0]
        two_plus = [tb for tb in cands if B // tb >= 2]
        pool = two_plus or cands
        if pool:
            return max(pool)
    return B


# ----------------------------- precompute ----------------------------------
def precompute_tables(params, *, seq_len, input_dim, tile_b, sampling_rate=250,
                      basis_dtype=jnp.bfloat16):
    """Build the stacked DFT basis, reduction rows, batch mask and expanded
    Linear weights ONCE (all small, O(tile_b) not O(tile_b^2) except the tiny
    mask)."""
    T, C = seq_len, input_dim
    F = T // 2 + 1
    F_pad = max(64, _round_up(F, 8))      # stacked basis rows = 2*F_pad (>=128)
    H = params["wp"].shape[1]
    L = tile_b * C

    t = jnp.arange(T, dtype=jnp.float32)
    f = jnp.arange(F, dtype=jnp.float32)
    ang = 2.0 * jnp.pi * f[:, None] * t[None, :] / T
    pad_rows = ((0, F_pad - F), (0, 0))
    basis = jnp.concatenate(
        [jnp.pad(jnp.cos(ang), pad_rows),
         jnp.pad(-jnp.sin(ang), pad_rows)], axis=0).astype(basis_dtype)  # (2F_pad, T)

    # rfftfreq normalized by Nyquist; mean over the TRUE F folded into the rows;
    # padded frequency columns carry zero weight.
    freqs = f * sampling_rate / T
    fw = freqs / (sampling_rate / 2.0)
    red_pw = jnp.pad((fw / F).reshape(1, F),
                     ((0, 0), (0, F_pad - F))).astype(jnp.float32)       # (1, F_pad)
    red_mean = jnp.pad(jnp.full((1, F), 1.0 / F, dtype=jnp.float32),
                       ((0, 0), (0, F_pad - F)))                         # (1, F_pad)

    # Batch-expansion mask M[b, l] = 1 iff lane l (within [pw|ph|co] x (b,c))
    # belongs to batch b.
    lane = jnp.arange(3 * L)
    brow = jnp.arange(tile_b)
    mask = ((lane[None, :] % L) // C == brow[:, None]).astype(jnp.float32)  # (tile_b, 3L)

    # Row-expanded first-layer weight: w1[group*L + b*C + c, :] = W_group[c, :]
    # placed in that group's output columns.  Size (3L, 3H) -- tiny & dense.
    def placed(w, slot):   # (C, H) -> (C, 3H) with w at columns slot*H:(slot+1)*H
        return jnp.pad(w, ((0, 0), (slot * H, (2 - slot) * H)))

    w1 = jnp.concatenate([jnp.tile(placed(params["wp"], 0), (tile_b, 1)),
                          jnp.tile(placed(params["wh"], 1), (tile_b, 1)),
                          jnp.tile(placed(params["wc"], 2), (tile_b, 1))],
                         axis=0)                                          # (3L, 3H)
    b1 = jnp.concatenate([params["bp"], params["bh"], params["bc"]], axis=-1)  # (1, 3H)
    w2 = params["wf"]                                                     # (3H, out)
    b2 = params["bf"]                                                     # (1, out)

    return dict(basis=basis, red_pw=red_pw, red_mean=red_mean, mask=mask,
                w1=w1, b1=b1, w2=w2, b2=b2)


# ----------------------------- wrapper -------------------------------------
def frequency_feature_extractor(x, tables, *, tile_b, out_dim):
    """x: (B, T, C) float32.  Returns (B, out_dim) float32."""
    B, T, C = x.shape
    assert B % tile_b == 0, (B, tile_b)
    num_blocks = B // tile_b
    L = tile_b * C

    # Fold batch into the lane axis: (B, T, C) -> (T, B*C), lanes ordered b*C+c.
    xT = jnp.transpose(x, (1, 0, 2)).reshape(T, B * C).astype(tables["basis"].dtype)

    full = lambda a: pl.BlockSpec(a.shape, lambda g: (0, 0))   # resident constants

    out = pl.pallas_call(
        _freq_feature_kernel,
        out_shape=jax.ShapeDtypeStruct((B, out_dim), jnp.float32),
        grid=(num_blocks,),
        in_specs=[
            pl.BlockSpec((T, L), lambda g: (0, g)),            # x batch block
            full(tables["basis"]),
            full(tables["red_pw"]), full(tables["red_mean"]),
            full(tables["mask"]),
            full(tables["w1"]), full(tables["b1"]),
            full(tables["w2"]), full(tables["b2"]),
        ],
        out_specs=pl.BlockSpec((tile_b, out_dim), lambda g: (g, 0)),
        compiler_params=pltpu.CompilerParams(
            dimension_semantics=("parallel",)),
    )(xT, tables["basis"], tables["red_pw"], tables["red_mean"], tables["mask"],
      tables["w1"], tables["b1"], tables["w2"], tables["b2"])

    return out


# --------------------------- pure-JAX reference -----------------------------
def reference(x, params, *, sampling_rate=250, basis_dtype=jnp.bfloat16):
    """Precision-matched reference: same bf16-rounded DFT basis / input, f32
    accumulation (mathematically identical to rfft up to the basis dtype)."""
    B, T, C = x.shape
    F = T // 2 + 1
    t = jnp.arange(T, dtype=jnp.float32)
    f = jnp.arange(F, dtype=jnp.float32)
    ang = 2.0 * jnp.pi * f[:, None] * t[None, :] / T
    cos_ft = jnp.cos(ang).astype(basis_dtype).astype(jnp.float32)
    nsin_ft = (-jnp.sin(ang)).astype(basis_dtype).astype(jnp.float32)
    xb = x.astype(basis_dtype).astype(jnp.float32)

    with jax.default_matmul_precision("highest"):
        xr = jnp.einsum('ft,btc->bfc', cos_ft, xb)
        xi = jnp.einsum('ft,btc->bfc', nsin_ft, xb)
        power = xr * xr + xi * xi
        mag = jnp.sqrt(power + 1e-12)
        phase = xi / mag
        freqs = f * sampling_rate / T
        fwt = (freqs / (sampling_rate / 2.0))[None, :, None]
        pw_feat = jnp.mean(power * fwt, axis=1)
        ph_feat = jnp.mean(phase, axis=1)
        co_feat = jnp.mean(mag, axis=1)
        relu = lambda v: jnp.maximum(v, 0.0)
        p = relu(pw_feat @ params["wp"] + params["bp"])
        h = relu(ph_feat @ params["wh"] + params["bh"])
        c = relu(co_feat @ params["wc"] + params["bc"])
        combined = jnp.concatenate([p, h, c], axis=-1)
        return relu(combined @ params["wf"] + params["bf"])


# ----------------------------- main ----------------------------------------
if __name__ == "__main__":
    B, T, C = 64, 64, 4         # batch, seq_len, input_dim
    H = 8                       # per-spectral-net output_dim
    OUT = 16                    # fusion output_dim
    TOTAL = 3 * H

    key = jax.random.PRNGKey(0)
    kx, kp, kh, kc, kf = jax.random.split(key, 5)
    x = jax.random.normal(kx, (B, T, C), dtype=jnp.float32)

    def init_linear(k, fan_in, fan_out):
        kw, kb = jax.random.split(k)
        scale = 1.0 / jnp.sqrt(jnp.float32(fan_in))
        w = jax.random.uniform(kw, (fan_in, fan_out), jnp.float32, -scale, scale)
        b = jax.random.uniform(kb, (1, fan_out), jnp.float32, -scale, scale)
        return w, b

    wp, bp = init_linear(kp, C, H)
    wh, bh = init_linear(kh, C, H)
    wc, bc = init_linear(kc, C, H)
    wf, bf = init_linear(kf, TOTAL, OUT)
    params = dict(wp=wp, bp=bp, wh=wh, bh=bh, wc=wc, bc=bc, wf=wf, bf=bf)

    tile_b = _choose_tile_b(B, C)          # -> 32: lane width 128, grid of 2
    tables = precompute_tables(params, seq_len=T, input_dim=C, tile_b=tile_b,
                               sampling_rate=250, basis_dtype=jnp.bfloat16)

    fwd = jax.jit(functools.partial(frequency_feature_extractor,
                                    tile_b=tile_b, out_dim=OUT))
    out = jax.block_until_ready(fwd(x, tables))

    ref = reference(x, params, sampling_rate=250, basis_dtype=jnp.bfloat16)
    assert out.shape == (B, OUT), out.shape
    assert jnp.allclose(out, ref, rtol=2e-2, atol=2e-2), \
        f"max abs err {jnp.max(jnp.abs(out - ref))}"

    print("KERNEL_OK")
</pallas_src>

<mosaic_0001>
module attributes {stable_mosaic.version = 11 : i64} {
  func.func @_freq_feature_kernel(%arg0: i32, %arg1: memref<64x128xbf16, #tpu.memory_space<vmem>>, %arg2: memref<128x64xbf16, #tpu.memory_space<vmem>>, %arg3: memref<1x64xf32, #tpu.memory_space<vmem>>, %arg4: memref<1x64xf32, #tpu.memory_space<vmem>>, %arg5: memref<32x384xf32, #tpu.memory_space<vmem>>, %arg6: memref<384x24xf32, #tpu.memory_space<vmem>>, %arg7: memref<1x24xf32, #tpu.memory_space<vmem>>, %arg8: memref<24x16xf32, #tpu.memory_space<vmem>>, %arg9: memref<1x16xf32, #tpu.memory_space<vmem>>, %arg10: memref<32x16xf32, #tpu.memory_space<vmem>>) attributes {dimension_semantics = [#tpu.dimension_semantics<parallel>], iteration_bounds = array<i64: 2>, scalar_prefetch = 0 : i64, scratch_operands = 0 : i64, tpu.core_type = #tpu.core_type<tc>, window_params = [{transform_indices = @transform_0, window_bounds = array<i64: 64, 128>}, {pipeline_mode = #tpu.pipeline_mode<synchronous>, transform_indices = @transform_1, window_bounds = array<i64: 128, 64>}, {pipeline_mode = #tpu.pipeline_mode<synchronous>, transform_indices = @transform_2, window_bounds = array<i64: 1, 64>}, {pipeline_mode = #tpu.pipeline_mode<synchronous>, transform_indices = @transform_3, window_bounds = array<i64: 1, 64>}, {pipeline_mode = #tpu.pipeline_mode<synchronous>, transform_indices = @transform_4, window_bounds = array<i64: 32, 384>}, {pipeline_mode = #tpu.pipeline_mode<synchronous>, transform_indices = @transform_5, window_bounds = array<i64: 384, 24>}, {pipeline_mode = #tpu.pipeline_mode<synchronous>, transform_indices = @transform_6, window_bounds = array<i64: 1, 24>}, {pipeline_mode = #tpu.pipeline_mode<synchronous>, transform_indices = @transform_7, window_bounds = array<i64: 24, 16>}, {pipeline_mode = #tpu.pipeline_mode<synchronous>, transform_indices = @transform_8, window_bounds = array<i64: 1, 16>}, {transform_indices = @transform_9, window_bounds = array<i64: 32, 16>}]} {
    %c0 = arith.constant 0 : index
    %c0_0 = arith.constant 0 : index
    %0 = vector.load %arg2[%c0, %c0_0] : memref<128x64xbf16, #tpu.memory_space<vmem>>, vector<128x64xbf16>
    %c0_1 = arith.constant 0 : index
    %c0_2 = arith.constant 0 : index
    %1 = vector.load %arg1[%c0_1, %c0_2] : memref<64x128xbf16, #tpu.memory_space<vmem>>, vector<64x128xbf16>
    %cst = arith.constant dense<0.000000e+00> : vector<128x128xf32>
    %2 = tpu.matmul %0, %1, %cst {dimension_numbers = #tpu.dot_dimension_numbers<[1], [0], [0], [1], [0, 0, 1, 1], [], []>} : vector<128x64xbf16>, vector<64x128xbf16>, vector<128x128xf32> -> vector<128x128xf32>
    %3 = vector.extract_strided_slice %2 {offsets = [0, 0], sizes = [64, 128], strides = [1, 1]} : vector<128x128xf32> to vector<64x128xf32>
    %4 = vector.extract_strided_slice %2 {offsets = [64, 0], sizes = [64, 128], strides = [1, 1]} : vector<128x128xf32> to vector<64x128xf32>
    %5 = arith.mulf %3, %3 : vector<64x128xf32>
    %6 = arith.mulf %4, %4 : vector<64x128xf32>
    %7 = arith.addf %5, %6 : vector<64x128xf32>
    %cst_3 = arith.constant 9.99999996E-13 : f32
    %8 = vector.broadcast %cst_3 : f32 to vector<64x128xf32>
    %9 = arith.addf %7, %8 : vector<64x128xf32>
    %10 = math.rsqrt %9 : vector<64x128xf32>
    %11 = arith.mulf %9, %10 : vector<64x128xf32>
    %12 = arith.mulf %4, %10 : vector<64x128xf32>
    %c0_4 = arith.constant 0 : index
    %c0_5 = arith.constant 0 : index
    %13 = vector.load %arg3[%c0_4, %c0_5] : memref<1x64xf32, #tpu.memory_space<vmem>>, vector<1x64xf32>
    %cst_6 = arith.constant dense<0.000000e+00> : vector<1x128xf32>
    %14 = tpu.matmul %13, %7, %cst_6 {dimension_numbers = #tpu.dot_dimension_numbers<[1], [0], [0], [1], [0, 0, 1, 1], [], []>} : vector<1x64xf32>, vector<64x128xf32>, vector<1x128xf32> -> vector<1x128xf32>
    %c0_7 = arith.constant 0 : index
    %c0_8 = arith.constant 0 : index
    %15 = vector.load %arg4[%c0_7, %c0_8] : memref<1x64xf32, #tpu.memory_space<vmem>>, vector<1x64xf32>
    %16 = tpu.concatenate %12, %11 in 1 : vector<64x128xf32>, vector<64x128xf32> -> vector<64x256xf32>
    %cst_9 = arith.constant dense<0.000000e+00> : vector<1x256xf32>
    %17 = tpu.matmul %15, %16, %cst_9 {dimension_numbers = #tpu.dot_dimension_numbers<[1], [0], [0], [1], [0, 0, 1, 1], [], []>} : vector<1x64xf32>, vector<64x256xf32>, vector<1x256xf32> -> vector<1x256xf32>
    %18 = tpu.concatenate %14, %17 in 1 : vector<1x128xf32>, vector<1x256xf32> -> vector<1x384xf32>
    %c0_10 = arith.constant 0 : index
    %c0_11 = arith.constant 0 : index
    %19 = vector.load %arg5[%c0_10, %c0_11] : memref<32x384xf32, #tpu.memory_space<vmem>>, vector<32x384xf32>
    %20 = vector.broadcast %18 : vector<1x384xf32> to vector<32x384xf32>
    %21 = arith.mulf %20, %19 : vector<32x384xf32>
    %c0_12 = arith.constant 0 : index
    %c0_13 = arith.constant 0 : index
    %22 = vector.load %arg6[%c0_12, %c0_13] : memref<384x24xf32, #tpu.memory_space<vmem>>, vector<384x24xf32>
    %cst_14 = arith.constant dense<0.000000e+00> : vector<32x24xf32>
    %23 = tpu.matmul %21, %22, %cst_14 {dimension_numbers = #tpu.dot_dimension_numbers<[1], [0], [0], [1], [0, 0, 1, 1], [], []>} : vector<32x384xf32>, vector<384x24xf32>, vector<32x24xf32> -> vector<32x24xf32>
    %c0_15 = arith.constant 0 : index
    %c0_16 = arith.constant 0 : index
    %24 = vector.load %arg7[%c0_15, %c0_16] : memref<1x24xf32, #tpu.memory_space<vmem>>, vector<1x24xf32>
    %25 = vector.broadcast %24 : vector<1x24xf32> to vector<32x24xf32>
    %26 = arith.addf %23, %25 : vector<32x24xf32>
    %cst_17 = arith.constant 0.000000e+00 : f32
    %27 = vector.broadcast %cst_17 : f32 to vector<32x24xf32>
    %28 = arith.maximumf %26, %27 : vector<32x24xf32>
    %c0_18 = arith.constant 0 : index
    %c0_19 = arith.constant 0 : index
    %29 = vector.load %arg8[%c0_18, %c0_19] : memref<24x16xf32, #tpu.memory_space<vmem>>, vector<24x16xf32>
    %cst_20 = arith.constant dense<0.000000e+00> : vector<32x16xf32>
    %30 = tpu.matmul %28, %29, %cst_20 {dimension_numbers = #tpu.dot_dimension_numbers<[1], [0], [0], [1], [0, 0, 1, 1], [], []>} : vector<32x24xf32>, vector<24x16xf32>, vector<32x16xf32> -> vector<32x16xf32>
    %c0_21 = arith.constant 0 : index
    %c0_22 = arith.constant 0 : index
    %31 = vector.load %arg9[%c0_21, %c0_22] : memref<1x16xf32, #tpu.memory_space<vmem>>, vector<1x16xf32>
    %32 = vector.broadcast %31 : vector<1x16xf32> to vector<32x16xf32>
    %33 = arith.addf %30, %32 : vector<32x16xf32>
    %cst_23 = arith.constant 0.000000e+00 : f32
    %34 = vector.broadcast %cst_23 : f32 to vector<32x16xf32>
    %35 = arith.maximumf %33, %34 : vector<32x16xf32>
    %c0_24 = arith.constant 0 : index
    %c0_25 = arith.constant 0 : index
    %36 = vector.load %arg10[%c0_24, %c0_25] : memref<32x16xf32, #tpu.memory_space<vmem>>, vector<32x16xf32>
    tpu.vector_store %arg10[%c0_24, %c0_25], %35 {strides = array<i32>} : memref<32x16xf32, #tpu.memory_space<vmem>>, vector<32x16xf32>,
    return
  }
  func.func @transform_0(%arg0: i32) -> (i32, i32) {
    %c0_i32 = arith.constant 0 : i32
    %c0_i32_0 = arith.constant 0 : i32
    return %c0_i32, %arg0 : i32, i32
  }
  func.func @transform_1(%arg0: i32) -> (i32, i32) {
    %c0_i32 = arith.constant 0 : i32
    %c0_i32_0 = arith.constant 0 : i32
    %c0_i32_1 = arith.constant 0 : i32
    return %c0_i32, %c0_i32_0 : i32, i32
  }
  func.func @transform_2(%arg0: i32) -> (i32, i32) {
    %c0_i32 = arith.constant 0 : i32
    %c0_i32_0 = arith.constant 0 : i32
    %c0_i32_1 = arith.constant 0 : i32
    return %c0_i32, %c0_i32_0 : i32, i32
  }
  func.func @transform_3(%arg0: i32) -> (i32, i32) {
    %c0_i32 = arith.constant 0 : i32
    %c0_i32_0 = arith.constant 0 : i32
    %c0_i32_1 = arith.constant 0 : i32
    return %c0_i32, %c0_i32_0 : i32, i32
  }
  func.func @transform_4(%arg0: i32) -> (i32, i32) {
    %c0_i32 = arith.constant 0 : i32
    %c0_i32_0 = arith.constant 0 : i32
    %c0_i32_1 = arith.constant 0 : i32
    return %c0_i32, %c0_i32_0 : i32, i32
  }
  func.func @transform_5(%arg0: i32) -> (i32, i32) {
    %c0_i32 = arith.constant 0 : i32
    %c0_i32_0 = arith.constant 0 : i32
    %c0_i32_1 = arith.constant 0 : i32
    return %c0_i32, %c0_i32_0 : i32, i32
  }
  func.func @transform_6(%arg0: i32) -> (i32, i32) {
    %c0_i32 = arith.constant 0 : i32
    %c0_i32_0 = arith.constant 0 : i32
    %c0_i32_1 = arith.constant 0 : i32
    return %c0_i32, %c0_i32_0 : i32, i32
  }
  func.func @transform_7(%arg0: i32) -> (i32, i32) {
    %c0_i32 = arith.constant 0 : i32
    %c0_i32_0 = arith.constant 0 : i32
    %c0_i32_1 = arith.constant 0 : i32
    return %c0_i32, %c0_i32_0 : i32, i32
  }
  func.func @transform_8(%arg0: i32) -> (i32, i32) {
    %c0_i32 = arith.constant 0 : i32
    %c0_i32_0 = arith.constant 0 : i32
    %c0_i32_1 = arith.constant 0 : i32
    return %c0_i32, %c0_i32_0 : i32, i32
  }
  func.func @transform_9(%arg0: i32) -> (i32, i32) {
    %c0_i32 = arith.constant 0 : i32
    %c0_i32_0 = arith.constant 0 : i32
    return %arg0, %c0_i32 : i32, i32
  }
}

</mosaic_0001>

<llo_original>
// kernel: frequency_feature_extractor.1
$region0: #{frequency_feature_extractor.1}
  #allocation0 [shape = 'u32[]', space=smem, size = 0x4, offset = 0x4, fixed_abs, tag = 'smem constant byte address 0x4 - core index']
  #allocation1 [shape = 'u32[144,128]{1,0:T(1,128)}', space=vmem, size = 0x12000, scoped, tag = 'internal scratch']
  %s0 = inlined_call_operand.vmem [shape: bf16[64,256], index: 0, kind: input, shape index: {}]
  %s1 = inlined_call_operand.vmem [shape: bf16[128,64], index: 1, kind: input, shape index: {}]
  %s2 = inlined_call_operand.vmem [shape: f32[1,64], index: 2, kind: input, shape index: {}]
  %s3 = inlined_call_operand.vmem [shape: f32[1,64], index: 3, kind: input, shape index: {}]
  %s4 = inlined_call_operand.vmem [shape: f32[32,384], index: 4, kind: input, shape index: {}]
  %s5 = inlined_call_operand.vmem [shape: f32[384,24], index: 5, kind: input, shape index: {}]
  %s6 = inlined_call_operand.vmem [shape: f32[1,24], index: 6, kind: input, shape index: {}]
  %s7 = inlined_call_operand.vmem [shape: f32[24,16], index: 7, kind: input, shape index: {}]
  %s8 = inlined_call_operand.vmem [shape: f32[1,16], index: 8, kind: input, shape index: {}]
  %s9 = inlined_call_operand.vmem [shape: f32[64,16], index: 9, kind: output, shape index: {}]
  %s10 = sld [smem:[#allocation0]]
  $region110: #{frequency_feature_extractor.1} parent=0
    _
  %s12 = ssub.s32 1, %s10
  %s13 = scalar_select 0, %s12, %s10
  $region1: #{frequency_feature_extractor.1} parent=0
    #allocation2 [shape = 'u8[32768]{0}', space=vmem, size = 0x8000, scoped, tag = 'input window, operand 0']
    loop: start=0, step=1, limit=4
    $region2: #{frequency_feature_extractor.1} parent=1 // loop_pre_header
      _
    $region3: #{frequency_feature_extractor.1} parent=1 // loop_header
      %s15 = sphi 0, %s19
      %p16 = scmp.ge.s32.totalorder %s15, 4
      %s25 = sphi 0, %s27
      %s28 = sphi 0, %s25
      %s29 = sphi 0, %s28
      %s45 = sphi 0, %s29
      %s49 = sphi 0, %s49
      %s51 = sphi 0, %s49
      %s52 = sphi 0, %s51
      %s66 = sphi 0, %s52
      %s70 = sphi 0, %s70
      %s72 = sphi 0, %s70
      %s73 = sphi 0, %s72
      %s87 = sphi 0, %s73
      %s91 = sphi 0, %s91
      %s93 = sphi 0, %s91
      %s94 = sphi 0, %s93
      %s108 = sphi 0, %s94
      %s112 = sphi 0, %s112
      %s114 = sphi 0, %s112
      %s115 = sphi 0, %s114
      %s129 = sphi 0, %s115
      %s133 = sphi 0, %s133
      %s135 = sphi 0, %s133
      %s136 = sphi 0, %s135
      %s150 = sphi 0, %s136
      %s154 = sphi 0, %s154
      %s156 = sphi 0, %s154
      %s157 = sphi 0, %s156
      %s171 = sphi 0, %s157
      %s175 = sphi 0, %s175
      %s177 = sphi 0, %s175
      %s178 = sphi 0, %s177
      %s192 = sphi 0, %s178
      %s196 = sphi 0, %s196
      %s198 = sphi 0, %s196
      %s199 = sphi 0, %s198
      %s213 = sphi 0, %s199
      %s219 = sphi 0, %s221
      %s222 = sphi 0, %s219
      %s223 = sphi 0, %s222
      %s239 = sphi 0, %s223
    $region4: #{frequency_feature_extractor.1} parent=1 // loop_header_branch
      %18 = sbr.rel (%p16) target = $region8
    $region5: #{frequency_feature_extractor.1} parent=1 // loop_body
      %s20 = ssub.s32 %s15, 1
      %s21 = ssub.s32 %s15, 2
      %s22 = sadd.s32 %s15, 1
      %s23 = ssub.s32 %s15, %s22
      %p24 = scmp.eq.s32.totalorder %s23, 0
      %s26 = sadd.s32 %s25, 1
      %s27 = scalar_select %p24, %s25, %s26
      %p30 = pneg %p24
      %p31 = scmp.eq.s32.totalorder %s15, 1
      %p32 = por %p30, %p31
      %p33 = scmp.ne.s32.totalorder %s25, %s28
      %p34 = scmp.eq.s32.totalorder %s15, 0
      %p35 = por %p33, %p34
      %p36 = scmp.ne.s32.totalorder %s25, %s28
      %p37 = scmp.eq.s32.totalorder %s20, 1
      %p38 = por %p36, %p37
      %p39 = scmp.ne.s32.totalorder %s28, %s29
      %p40 = scmp.eq.s32.totalorder %s20, 0
      %p41 = por %p39, %p40
      %p42 = scmp.ne.s32.totalorder %s28, %s29
      %p43 = scmp.eq.s32.totalorder %s21, 1
      %p44 = por %p42, %p43
      %p46 = scmp.ne.s32.totalorder %s29, %s45
      %p47 = scmp.eq.s32.totalorder %s21, 0
      %p48 = por %p46, %p47
      %s50 = sadd.s32 %s49, 1
      %p53 = scmp.eq.s32.totalorder %s15, 1
      %p54 = scmp.ne.s32.totalorder %s49, %s51
      %p55 = scmp.eq.s32.totalorder %s15, 0
      %p56 = por %p54, %p55
      %p57 = scmp.ne.s32.totalorder %s49, %s51
      %p58 = scmp.eq.s32.totalorder %s20, 1
      %p59 = por %p57, %p58
      %p60 = scmp.ne.s32.totalorder %s51, %s52
      %p61 = scmp.eq.s32.totalorder %s20, 0
      %p62 = por %p60, %p61
      %p63 = scmp.ne.s32.totalorder %s51, %s52
      %p64 = scmp.eq.s32.totalorder %s21, 1
      %p65 = por %p63, %p64
      %p67 = scmp.ne.s32.totalorder %s52, %s66
      %p68 = scmp.eq.s32.totalorder %s21, 0
      %p69 = por %p67, %p68
      %s71 = sadd.s32 %s70, 1
      %p74 = scmp.eq.s32.totalorder %s15, 1
      %p75 = scmp.ne.s32.totalorder %s70, %s72
      %p76 = scmp.eq.s32.totalorder %s15, 0
      %p77 = por %p75, %p76
      %p78 = scmp.ne.s32.totalorder %s70, %s72
      %p79 = scmp.eq.s32.totalorder %s20, 1
      %p80 = por %p78, %p79
      %p81 = scmp.ne.s32.totalorder %s72, %s73
      %p82 = scmp.eq.s32.totalorder %s20, 0
      %p83 = por %p81, %p82
      %p84 = scmp.ne.s32.totalorder %s72, %s73
      %p85 = scmp.eq.s32.totalorder %s21, 1
      %p86 = por %p84, %p85
      %p88 = scmp.ne.s32.totalorder %s73, %s87
      %p89 = scmp.eq.s32.totalorder %s21, 0
      %p90 = por %p88, %p89
      %s92 = sadd.s32 %s91, 1
      %p95 = scmp.eq.s32.totalorder %s15, 1
      %p96 = scmp.ne.s32.totalorder %s91, %s93
      %p97 = scmp.eq.s32.totalorder %s15, 0
      %p98 = por %p96, %p97
      %p99 = scmp.ne.s32.totalorder %s91, %s93
      %p100 = scmp.eq.s32.totalorder %s20, 1
      %p101 = por %p99, %p100
      %p102 = scmp.ne.s32.totalorder %s93, %s94
      %p103 = scmp.eq.s32.totalorder %s20, 0
      %p104 = por %p102, %p103
      %p105 = scmp.ne.s32.totalorder %s93, %s94
      %p106 = scmp.eq.s32.totalorder %s21, 1
      %p107 = por %p105, %p106
      %p109 = scmp.ne.s32.totalorder %s94, %s108
      %p110 = scmp.eq.s32.totalorder %s21, 0
      %p111 = por %p109, %p110
      %s113 = sadd.s32 %s112, 1
      %p116 = scmp.eq.s32.totalorder %s15, 1
      %p117 = scmp.ne.s32.totalorder %s112, %s114
      %p118 = scmp.eq.s32.totalorder %s15, 0
      %p119 = por %p117, %p118
      %p120 = scmp.ne.s32.totalorder %s112, %s114
      %p121 = scmp.eq.s32.totalorder %s20, 1
      %p122 = por %p120, %p121
      %p123 = scmp.ne.s32.totalorder %s114, %s115
      %p124 = scmp.eq.s32.totalorder %s20, 0
      %p125 = por %p123, %p124
      %p126 = scmp.ne.s32.totalorder %s114, %s115
      %p127 = scmp.eq.s32.totalorder %s21, 1
      %p128 = por %p126, %p127
      %p130 = scmp.ne.s32.totalorder %s115, %s129
      %p131 = scmp.eq.s32.totalorder %s21, 0
      %p132 = por %p130, %p131
      %s134 = sadd.s32 %s133, 1
      %p137 = scmp.eq.s32.totalorder %s15, 1
      %p138 = scmp.ne.s32.totalorder %s133, %s135
      %p139 = scmp.eq.s32.totalorder %s15, 0
      %p140 = por %p138, %p139
      %p141 = scmp.ne.s32.totalorder %s133, %s135
      %p142 = scmp.eq.s32.totalorder %s20, 1
      %p143 = por %p141, %p142
      %p144 = scmp.ne.s32.totalorder %s135, %s136
      %p145 = scmp.eq.s32.totalorder %s20, 0
      %p146 = por %p144, %p145
      %p147 = scmp.ne.s32.totalorder %s135, %s136
      %p148 = scmp.eq.s32.totalorder %s21, 1
      %p149 = por %p147, %p148
      %p151 = scmp.ne.s32.totalorder %s136, %s150
      %p152 = scmp.eq.s32.totalorder %s21, 0
      %p153 = por %p151, %p152
      %s155 = sadd.s32 %s154, 1
      %p158 = scmp.eq.s32.totalorder %s15, 1
      %p159 = scmp.ne.s32.totalorder %s154, %s156
      %p160 = scmp.eq.s32.totalorder %s15, 0
      %p161 = por %p159, %p160
      %p162 = scmp.ne.s32.totalorder %s154, %s156
      %p163 = scmp.eq.s32.totalorder %s20, 1
      %p164 = por %p162, %p163
      %p165 = scmp.ne.s32.totalorder %s156, %s157
      %p166 = scmp.eq.s32.totalorder %s20, 0
      %p167 = por %p165, %p166
      %p168 = scmp.ne.s32.totalorder %s156, %s157
      %p169 = scmp.eq.s32.totalorder %s21, 1
      %p170 = por %p168, %p169
      %p172 = scmp.ne.s32.totalorder %s157, %s171
      %p173 = scmp.eq.s32.totalorder %s21, 0
      %p174 = por %p172, %p173
      %s176 = sadd.s32 %s175, 1
      %p179 = scmp.eq.s32.totalorder %s15, 1
      %p180 = scmp.ne.s32.totalorder %s175, %s177
      %p181 = scmp.eq.s32.totalorder %s15, 0
      %p182 = por %p180, %p181
      %p183 = scmp.ne.s32.totalorder %s175, %s177
      %p184 = scmp.eq.s32.totalorder %s20, 1
      %p185 = por %p183, %p184
      %p186 = scmp.ne.s32.totalorder %s177, %s178
      %p187 = scmp.eq.s32.totalorder %s20, 0
      %p188 = por %p186, %p187
      %p189 = scmp.ne.s32.totalorder %s177, %s178
      %p190 = scmp.eq.s32.totalorder %s21, 1
      %p191 = por %p189, %p190
      %p193 = scmp.ne.s32.totalorder %s178, %s192
      %p194 = scmp.eq.s32.totalorder %s21, 0
      %p195 = por %p193, %p194
      %s197 = sadd.s32 %s196, 1
      %p200 = scmp.eq.s32.totalorder %s15, 1
      %p201 = scmp.ne.s32.totalorder %s196, %s198
      %p202 = scmp.eq.s32.totalorder %s15, 0
      %p203 = por %p201, %p202
      %p204 = scmp.ne.s32.totalorder %s196, %s198
      %p205 = scmp.eq.s32.totalorder %s20, 1
      %p206 = por %p204, %p205
      %p207 = scmp.ne.s32.totalorder %s198, %s199
      %p208 = scmp.eq.s32.totalorder %s20, 0
      %p209 = por %p207, %p208
      %p210 = scmp.ne.s32.totalorder %s198, %s199
      %p211 = scmp.eq.s32.totalorder %s21, 1
      %p212 = por %p210, %p211
      %p214 = scmp.ne.s32.totalorder %s199, %s213
      %p215 = scmp.eq.s32.totalorder %s21, 0
      %p216 = por %p214, %p215
      %s217 = ssub.s32 %s15, %s22
      %p218 = scmp.eq.s32.totalorder %s217, 0
      %s220 = sadd.s32 %s219, 1
      %s221 = scalar_select %p218, %s219, %s220
      %p224 = pneg %p218
      %p225 = scmp.eq.s32.totalorder %s15, 1
      %p226 = por %p224, %p225
      %p227 = scmp.ne.s32.totalorder %s219, %s222
      %p228 = scmp.eq.s32.totalorder %s15, 0
      %p229 = por %p227, %p228
      %p230 = scmp.ne.s32.totalorder %s219, %s222
      %p231 = scmp.eq.s32.totalorder %s20, 1
      %p232 = por %p230, %p231
      %p233 = scmp.ne.s32.totalorder %s222, %s223
      %p234 = scmp.eq.s32.totalorder %s20, 0
      %p235 = por %p233, %p234
      %p236 = scmp.ne.s32.totalorder %s222, %s223
      %p237 = scmp.eq.s32.totalorder %s21, 1
      %p238 = por %p236, %p237
      %p240 = scmp.ne.s32.totalorder %s223, %s239
      %p241 = scmp.eq.s32.totalorder %s21, 0
      %p242 = por %p240, %p241
      %p243 = scmp.le.s32.totalorder 1, %s15
      %p244 = scmp.lt.s32.totalorder %s15, 3
      %p245 = pnand %p243, %p244
      %p246 = pneg %p245
      // Predicated region
      $region9: #{frequency_feature_extractor.1} parent=5 // pred_check
        _
      $region10: #{frequency_feature_extractor.1} parent=5 // pred_check_branch
        %248 = sbr.rel (%p245) target = $region12
      $region11: #{frequency_feature_extractor.1} parent=5 // pred_region
        %s249 = ssub.s32 %s15, 1
        // Predicated region
        $region13: #{frequency_feature_extractor.1} parent=11 // pred_check
          %p250 = pneg %p62
        $region14: #{frequency_feature_extractor.1} parent=11 // pred_check_branch
          %252 = sbr.rel (%p250) target = $region16
        $region15: #{frequency_feature_extractor.1} parent=11 // pred_region
          _
        $region16: #{frequency_feature_extractor.1} parent=11 // pred_fallthru
          _
        // Predicated region
        $region17: #{frequency_feature_extractor.1} parent=11 // pred_check
          %p253 = pneg %p83
        $region18: #{frequency_feature_extractor.1} parent=11 // pred_check_branch
          %255 = sbr.rel (%p253) target = $region20
        $region19: #{frequency_feature_extractor.1} parent=11 // pred_region
          _
        $region20: #{frequency_feature_extractor.1} parent=11 // pred_fallthru
          _
        // Predicated region
        $region21: #{frequency_feature_extractor.1} parent=11 // pred_check
          %p256 = pneg %p104
        $region22: #{frequency_feature_extractor.1} parent=11 // pred_check_branch
          %258 = sbr.rel (%p256) target = $region24
        $region23: #{frequency_feature_extractor.1} parent=11 // pred_region
          _
        $region24: #{frequency_feature_extractor.1} parent=11 // pred_fallthru
          _
        // Predicated region
        $region25: #{frequency_feature_extractor.1} parent=11 // pred_check
          %p259 = pneg %p125
        $region26: #{frequency_feature_extractor.1} parent=11 // pred_check_branch
          %261 = sbr.rel (%p259) target = $region28
        $region27: #{frequency_feature_extractor.1} parent=11 // pred_region
          _
        $region28: #{frequency_feature_extractor.1} parent=11 // pred_fallthru
          _
        // Predicated region
        $region29: #{frequency_feature_extractor.1} parent=11 // pred_check
          %p262 = pneg %p146
        $region30: #{frequency_feature_extractor.1} parent=11 // pred_check_branch
          %264 = sbr.rel (%p262) target = $region32
        $region31: #{frequency_feature_extractor.1} parent=11 // pred_region
          _
        $region32: #{frequency_feature_extractor.1} parent=11 // pred_fallthru
          _
        // Predicated region
        $region33: #{frequency_feature_extractor.1} parent=11 // pred_check
          %p265 = pneg %p167
        $region34: #{frequency_feature_extractor.1} parent=11 // pred_check_branch
          %267 = sbr.rel (%p265) target = $region36
        $region35: #{frequency_feature_extractor.1} parent=11 // pred_region
          _
        $region36: #{frequency_feature_extractor.1} parent=11 // pred_fallthru
          _
        // Predicated region
        $region37: #{frequency_feature_extractor.1} parent=11 // pred_check
          %p268 = pneg %p188
        $region38: #{frequency_feature_extractor.1} parent=11 // pred_check_branch
          %270 = sbr.rel (%p268) target = $region40
        $region39: #{frequency_feature_extractor.1} parent=11 // pred_region
          _
        $region40: #{frequency_feature_extractor.1} parent=11 // pred_fallthru
          _
        // Predicated region
        $region41: #{frequency_feature_extractor.1} parent=11 // pred_check
          %p271 = pneg %p209
        $region42: #{frequency_feature_extractor.1} parent=11 // pred_check_branch
          %273 = sbr.rel (%p271) target = $region44
        $region43: #{frequency_feature_extractor.1} parent=11 // pred_region
          _
        $region44: #{frequency_feature_extractor.1} parent=11 // pred_fallthru
          _
      $region12: #{frequency_feature_extractor.1} parent=5 // pred_fallthru
        _
      %p274 = scmp.lt.s32.totalorder %s15, 2
      // Predicated region
      $region45: #{frequency_feature_extractor.1} parent=5 // pred_check
        %p275 = pneg %p274
      $region46: #{frequency_feature_extractor.1} parent=5 // pred_check_branch
        %277 = sbr.rel (%p275) target = $region48
      $region47: #{frequency_feature_extractor.1} parent=5 // pred_region
        // Predicated region
        $region49: #{frequency_feature_extractor.1} parent=47 // pred_check
          %p278 = pneg %p35
        $region50: #{frequency_feature_extractor.1} parent=47 // pred_check_branch
          %280 = sbr.rel (%p278) target = $region52
        $region51: #{frequency_feature_extractor.1} parent=47 // pred_region
          %s281 = sand.u32 %s25, 1
          %s282 = sand.u32 %s25, 1
          %s283 = smul.addr %s282, 32
          %s284 = scalar_lea.vmem [#allocation2], %s283
          %s285 = smul.addr %s15, 4
          %s286 = scalar_lea.vmem %s0, %s285
          // Predicated region
          $region53: #{frequency_feature_extractor.1} parent=51 // pred_check
            _
          $region54: #{frequency_feature_extractor.1} parent=51 // pred_check_branch
            %288 = sbr.rel (0) target = $region56
          $region55: #{frequency_feature_extractor.1} parent=51 // pred_region
            // Predicated region
            $region57: #{frequency_feature_extractor.1} parent=55 // pred_check
              _
            $region58: #{frequency_feature_extractor.1} parent=55 // pred_check_branch
              %290 = sbr.rel target = $region60
            $region59: #{frequency_feature_extractor.1} parent=55 // pred_region
              // Predicated region
              $region72: #{frequency_feature_extractor.1} parent=59 // pred_check
                _
              $region73: #{frequency_feature_extractor.1} parent=59 // pred_check_branch
                %319 = sbr.rel (0) target = $region75
              $region74: #{frequency_feature_extractor.1} parent=59 // pred_region
                loop: start=0, step=1, limit=1
                $region76: #{frequency_feature_extractor.1} parent=74 // loop_pre_header
                  _
                $region77: #{frequency_feature_extractor.1} parent=74 // loop_header
                  %s321 = sphi 0, %s325
                  %p322 = scmp.ge.s32.totalorder %s321, 1
                  %s326 = sphi %s286, %s286
                  %s327 = sphi %s284, %s284
                $region78: #{frequency_feature_extractor.1} parent=74 // loop_header_branch
                  %324 = sbr.rel (%p322) target = $region82
                $region79: #{frequency_feature_extractor.1} parent=74 // loop_body
                  _
                $region80: #{frequency_feature_extractor.1} parent=74 // loop_footer
                  %s325 = sadd.s32 1, %s321
                $region81: #{frequency_feature_extractor.1} parent=74 // loop_footer_branch
                  %320 = sbr.rel target = $region77
                $region82: #{frequency_feature_extractor.1} parent=74 // loop_exit
                  _
                loop: start=0, step=1, limit=1
                $region83: #{frequency_feature_extractor.1} parent=74 // loop_pre_header
                  _
                $region84: #{frequency_feature_extractor.1} parent=74 // loop_header
                  %s330 = sphi 0, %s334
                  %p331 = scmp.ge.s32.totalorder %s330, 1
                  %s335 = sphi %s286, %s286
                  %s336 = sphi %s284, %s284
                $region85: #{frequency_feature_extractor.1} parent=74 // loop_header_branch
                  %333 = sbr.rel (%p331) target = $region89
                $region86: #{frequency_feature_extractor.1} parent=74 // loop_body
                  %v337 = vld [vmem:[%s335] sm:$0xf]
                  %338 = vst [vmem:[%s336] sm:$0xf] %v337
                  %v339 = vld [vmem:[%s335 + $0x8] sm:$0xf]
                  %340 = vst [vmem:[%s336 + $0x4] sm:$0xf] %v339
                  %v341 = vld [vmem:[%s335 + $0x10] sm:$0xf]
                  %342 = vst [vmem:[%s336 + $0x8] sm:$0xf] %v341
                  %v343 = vld [vmem:[%s335 + $0x18] sm:$0xf]
                  %344 = vst [vmem:[%s336 + $0xc] sm:$0xf] %v343
                  %v345 = vld [vmem:[%s335 + $0x20] sm:$0xf]
                  %346 = vst [vmem:[%s336 + $0x10] sm:$0xf] %v345
                  %v347 = vld [vmem:[%s335 + $0x28] sm:$0xf]
                  %348 = vst [vmem:[%s336 + $0x14] sm:$0xf] %v347
                  %v349 = vld [vmem:[%s335 + $0x30] sm:$0xf]
                  %350 = vst [vmem:[%s336 + $0x18] sm:$0xf] %v349
                  %v351 = vld [vmem:[%s335 + $0x38] sm:$0xf]
                  %352 = vst [vmem:[%s336 + $0x1c] sm:$0xf] %v351
                $region87: #{frequency_feature_extractor.1} parent=74 // loop_footer
                  %s334 = sadd.s32 1, %s330
                $region88: #{frequency_feature_extractor.1} parent=74 // loop_footer_branch
                  %329 = sbr.rel target = $region84
                $region89: #{frequency_feature_extractor.1} parent=74 // loop_exit
                  _
              $region75: #{frequency_feature_extractor.1} parent=59 // pred_fallthru
                _
            $region60: #{frequency_feature_extractor.1} parent=55 // pred_fallthru
              _
            // Predicated region
            $region61: #{frequency_feature_extractor.1} parent=55 // pred_check
              _
            $region62: #{frequency_feature_extractor.1} parent=55 // pred_check_branch
              %292 = sbr.rel (0) target = $region64
            $region63: #{frequency_feature_extractor.1} parent=55 // pred_region
              loop: start=0, step=1, limit=1
              $region65: #{frequency_feature_extractor.1} parent=63 // loop_pre_header
                _
              $region66: #{frequency_feature_extractor.1} parent=63 // loop_header
                %s295 = sphi 0, %s299
                %p296 = scmp.ge.s32.totalorder %s295, 1
                %s300 = sphi %s286, %s286
                %s301 = sphi %s284, %s284
              $region67: #{frequency_feature_extractor.1} parent=63 // loop_header_branch
                %298 = sbr.rel (%p296) target = $region71
              $region68: #{frequency_feature_extractor.1} parent=63 // loop_body
                %v302 = vld [vmem:[%s300] sm:$0xf]
                %303 = vst [vmem:[%s301] sm:$0xf] %v302
                %v304 = vld [vmem:[%s300 + $0x8] sm:$0xf]
                %305 = vst [vmem:[%s301 + $0x4] sm:$0xf] %v304
                %v306 = vld [vmem:[%s300 + $0x10] sm:$0xf]
                %307 = vst [vmem:[%s301 + $0x8] sm:$0xf] %v306
                %v308 = vld [vmem:[%s300 + $0x18] sm:$0xf]
                %309 = vst [vmem:[%s301 + $0xc] sm:$0xf] %v308
                %v310 = vld [vmem:[%s300 + $0x20] sm:$0xf]
                %311 = vst [vmem:[%s301 + $0x10] sm:$0xf] %v310
                %v312 = vld [vmem:[%s300 + $0x28] sm:$0xf]
                %313 = vst [vmem:[%s301 + $0x14] sm:$0xf] %v312
                %v314 = vld [vmem:[%s300 + $0x30] sm:$0xf]
                %315 = vst [vmem:[%s301 + $0x18] sm:$0xf] %v314
                %v316 = vld [vmem:[%s300 + $0x38] sm:$0xf]
                %317 = vst [vmem:[%s301 + $0x1c] sm:$0xf] %v316
              $region69: #{frequency_feature_extractor.1} parent=63 // loop_footer
                %s299 = sadd.s32 1, %s295
              $region70: #{frequency_feature_extractor.1} parent=63 // loop_footer_branch
                %294 = sbr.rel target = $region66
              $region71: #{frequency_feature_extractor.1} parent=63 // loop_exit
                _
            $region64: #{frequency_feature_extractor.1} parent=55 // pred_fallthru
              _
          $region56: #{frequency_feature_extractor.1} parent=51 // pred_fallthru
            _
          %353 = vnop
        $region52: #{frequency_feature_extractor.1} parent=47 // pred_fallthru
          _
      $region48: #{frequency_feature_extractor.1} parent=5 // pred_fallthru
        _
      %p354 = scmp.le.s32.totalorder 1, %s15
      %p355 = scmp.lt.s32.totalorder %s15, 3
      %p356 = pnand %p354, %p355
      %p357 = pneg %p356
      // Predicated region
      $region90: #{frequency_feature_extractor.1} parent=5 // pred_check
        _
      $region91: #{frequency_feature_extractor.1} parent=5 // pred_check_branch
        %359 = sbr.rel (%p356) target = $region93
      $region92: #{frequency_feature_extractor.1} parent=5 // pred_region
        %s360 = ssub.s32 %s15, 1
        %s361 = sand.u32 %s28, 1
        %s362 = sand.u32 %s28, 1
        %s363 = smul.addr %s362, 32
        %s364 = scalar_lea.vmem [#allocation2], %s363
        // Predicated region
        $region94: #{frequency_feature_extractor.1} parent=92 // pred_check
          %p365 = pneg %p41
        $region95: #{frequency_feature_extractor.1} parent=92 // pred_check_branch
          %367 = sbr.rel (%p365) target = $region97
        $region96: #{frequency_feature_extractor.1} parent=92 // pred_region
          _
        $region97: #{frequency_feature_extractor.1} parent=92 // pred_fallthru
          _
        %s368 = sand.u32 %s28, 1
        %s369 = sand.u32 %s28, 1
        %s370 = smul.addr %s369, 32
        %s371 = scalar_lea.vmem [#allocation2], %s370
        %p372 = pneg %p41
        %p373 = pneg %p38
        %p374 = pneg %p62
        %p375 = pneg %p59
        %p376 = pneg %p83
        %p377 = pneg %p80
        %p378 = pneg %p104
        %p379 = pneg %p101
        %p380 = pneg %p125
        %p381 = pneg %p122
        %p382 = pneg %p146
        %p383 = pneg %p143
        %p384 = pneg %p167
        %p385 = pneg %p164
        %p386 = pneg %p188
        %p387 = pneg %p185
        %p388 = pneg %p209
        %p389 = pneg %p206
        %p390 = pneg %p235
        %p391 = pneg %p232
        %s392 = smul.u32 4, %s20
        %p393 = scmp.lt.s32.totalorder %s392, 7
        %s394 = scalar_select %p393, %s392, 7
        %s395 = smul.addr %s394, 8
        %s396 = scalar_lea.vmem %s9, %s395
        %s397 = smul.u32 4, %s20
        %p398 = scmp.lt.s32.totalorder %s397, 7
        %s399 = scalar_select %p398, %s397, 7
        %s400 = smul.addr %s399, 8
        %s401 = scalar_lea.vmem %s9, %s400
        %s402 = smul.u32 4, %s20
        %v404 = vld [vmem:[%s1] sm:$0xf]
        %v405 = vld [vmem:[%s1 + $0x4] sm:$0xf]
        %v406 = vld [vmem:[%s1 + $0x8] sm:$0xf]
        %v407 = vld [vmem:[%s1 + $0xc] sm:$0xf]
        %v408 = vld [vmem:[%s1 + $0x10] sm:$0xf]
        %v409 = vld [vmem:[%s1 + $0x14] sm:$0xf]
        %v410 = vld [vmem:[%s1 + $0x18] sm:$0xf]
        %v411 = vld [vmem:[%s1 + $0x1c] sm:$0xf]
        %v412 = vld [vmem:[%s1 + $0x20] sm:$0xf]
        %v413 = vld [vmem:[%s1 + $0x24] sm:$0xf]
        %v414 = vld [vmem:[%s1 + $0x28] sm:$0xf]
        %v415 = vld [vmem:[%s1 + $0x2c] sm:$0xf]
        %v416 = vld [vmem:[%s1 + $0x30] sm:$0xf]
        %v417 = vld [vmem:[%s1 + $0x34] sm:$0xf]
        %v418 = vld [vmem:[%s1 + $0x38] sm:$0xf]
        %v419 = vld [vmem:[%s1 + $0x3c] sm:$0xf]
        %v420 = vld [vmem:[%s364] sm:$0xf]
        %v421 = vld [vmem:[%s364 + $0x4] sm:$0xf]
        %v422 = vld [vmem:[%s364 + $0x8] sm:$0xf]
        %v423 = vld [vmem:[%s364 + $0xc] sm:$0xf]
        %v424 = vld [vmem:[%s364 + $0x10] sm:$0xf]
        %v425 = vld [vmem:[%s364 + $0x14] sm:$0xf]
        %v426 = vld [vmem:[%s364 + $0x18] sm:$0xf]
        %v427 = vld [vmem:[%s364 + $0x1c] sm:$0xf]
        %v444 = vunpack.c.l.b16 %v404
        %v445 = vunpack.c.l.b16 %v405
        %v446 = vunpack.c.l.b16 %v406
        %v447 = vunpack.c.l.b16 %v407
        %v448 = vunpack.c.l.b16 %v408
        %v449 = vunpack.c.l.b16 %v409
        %v450 = vunpack.c.l.b16 %v410
        %v451 = vunpack.c.l.b16 %v411
        %v452 = vunpack.c.l.b16 %v412
        %v453 = vunpack.c.l.b16 %v413
        %v454 = vunpack.c.l.b16 %v414
        %v455 = vunpack.c.l.b16 %v415
        %v456 = vunpack.c.l.b16 %v416
        %v457 = vunpack.c.l.b16 %v417
        %v458 = vunpack.c.l.b16 %v418
        %v459 = vunpack.c.l.b16 %v419
        %v460 = vpack.c.b16 %v445, %v444
        %v461 = vpack.c.b16 %v447, %v446
        %v462 = vpack.c.b16 %v449, %v448
        %v463 = vpack.c.b16 %v451, %v450
        %v464 = vpack.c.b16 %v453, %v452
        %v465 = vpack.c.b16 %v455, %v454
        %v466 = vpack.c.b16 %v457, %v456
        %v467 = vpack.c.b16 %v459, %v458
        %v476 = vunpack.c.l.b16 %v420
        %v477 = vunpack.c.l.b16 %v421
        %v478 = vunpack.c.l.b16 %v422
        %v479 = vunpack.c.l.b16 %v423
        %v480 = vunpack.c.l.b16 %v424
        %v481 = vunpack.c.l.b16 %v425
        %v482 = vunpack.c.l.b16 %v426
        %v483 = vunpack.c.l.b16 %v427
        %v484 = vpack.c.b16 %v477, %v476
        %v485 = vpack.c.b16 %v479, %v478
        %v486 = vpack.c.b16 %v481, %v480
        %v487 = vpack.c.b16 %v483, %v482
        %vm492 = vcmask 523264
        %v494 = vsel %vm492, %v460, 0
        %v497 = vsel %vm492, %v461, 0
        %v500 = vsel %vm492, %v462, 0
        %v503 = vsel %vm492, %v463, 0
        %v506 = vsel %vm492, %v464, 0
        %v509 = vsel %vm492, %v465, 0
        %v512 = vsel %vm492, %v466, 0
        %v515 = vsel %vm492, %v467, 0
        %517 = vmatprep.subr.bf16.mxu0 0
        %518 = vmatpush1.bf16.msra.mxu0 %v484
        %519 = vmatprep.subr.bf16.mxu0 0
        %520 = vmatpush1.bf16.msra.mxu0 %v485
        %521 = vmatprep.subr.bf16.mxu0 0
        %522 = vmatpush1.bf16.msra.mxu0 %v486
        %523 = vmatprep.subr.bf16.mxu0 0
        %524 = vmatpush1.bf16.msra.mxu0 %v487
        %525 = vmatprep.subr.bf16.mxu0 0
        %526 = vmatpush1.bf16.msra.mxu0 0
        %527 = vmatprep.subr.bf16.mxu0 0
        %528 = vmatpush1.bf16.msra.mxu0 0
        %529 = vmatprep.subr.bf16.mxu0 0
        %530 = vmatpush1.bf16.msra.mxu0 0
        %531 = vmatprep.subr.bf16.mxu0 0
        %532 = vmatpush1.bf16.msra.mxu0 0
        %533 = vmatprep.subr.bf16.mxu0 0
        %534 = vmatpush1.bf16.msra.mxu0 0
        %535 = vmatprep.subr.bf16.mxu0 0
        %536 = vmatpush1.bf16.msra.mxu0 0
        %537 = vmatprep.subr.bf16.mxu0 0
        %538 = vmatpush1.bf16.msra.mxu0 0
        %539 = vmatprep.subr.bf16.mxu0 0
        %540 = vmatpush1.bf16.msra.mxu0 0
        %541 = vmatprep.subr.bf16.mxu0 0
        %542 = vmatpush1.bf16.msra.mxu0 0
        %543 = vmatprep.subr.bf16.mxu0 0
        %544 = vmatpush1.bf16.msra.mxu0 0
        %545 = vmatprep.subr.bf16.mxu0 0
        %546 = vmatpush1.bf16.msra.mxu0 0
        %547 = vmatprep.subr.bf16.mxu0 0
        %548 = vmatpush1.bf16.msra.mxu0 0
        %549 = vmatprep.mubr.bf16.mxu0 0
        %550 = vmatmul.mubr.bf16.gmra.mrb[0].mxu0 %v494
        %v551 = vpop.f32.mrb[0].mxu0
        %v552 = vadd.f32 0.0, %v551
        %v553 = vpop.f32.mrb[0].mxu0
        %v554 = vpop.f32.mrb[0].mxu0
        %v555 = vadd.f32 0.0, %v554
        %v556 = vpop.f32.mrb[0].mxu0
        %557 = vmatprep.mubr.bf16.mxu0 0
        %558 = vmatmul.mubr.bf16.gmra.mrb[0].mxu0 %v497
        %v559 = vpop.f32.mrb[0].mxu0
        %v560 = vadd.f32 0.0, %v559
        %v561 = vpop.f32.mrb[0].mxu0
        %v562 = vpop.f32.mrb[0].mxu0
        %v563 = vadd.f32 0.0, %v562
        %v564 = vpop.f32.mrb[0].mxu0
        %565 = vmatprep.mubr.bf16.mxu0 0
        %566 = vmatmul.mubr.bf16.gmra.mrb[0].mxu0 %v500
        %v567 = vpop.f32.mrb[0].mxu0
        %v568 = vadd.f32 0.0, %v567
        %v569 = vpop.f32.mrb[0].mxu0
        %v570 = vpop.f32.mrb[0].mxu0
        %v571 = vadd.f32 0.0, %v570
        %v572 = vpop.f32.mrb[0].mxu0
        %573 = vmatprep.mubr.bf16.mxu0 0
        %574 = vmatmul.mubr.bf16.gmra.mrb[0].mxu0 %v503
        %v575 = vpop.f32.mrb[0].mxu0
        %v576 = vadd.f32 0.0, %v575
        %v577 = vpop.f32.mrb[0].mxu0
        %v578 = vpop.f32.mrb[0].mxu0
        %v579 = vadd.f32 0.0, %v578
        %v580 = vpop.f32.mrb[0].mxu0
        %581 = vmatprep.mubr.bf16.mxu0 0
        %582 = vmatmul.mubr.bf16.gmra.mrb[0].mxu0 %v506
        %v583 = vpop.f32.mrb[0].mxu0
        %v584 = vadd.f32 0.0, %v583
        %v585 = vpop.f32.mrb[0].mxu0
        %v586 = vpop.f32.mrb[0].mxu0
        %v587 = vadd.f32 0.0, %v586
        %v588 = vpop.f32.mrb[0].mxu0
        %589 = vmatprep.mubr.bf16.mxu0 0
        %590 = vmatmul.mubr.bf16.gmra.mrb[0].mxu0 %v509
        %v591 = vpop.f32.mrb[0].mxu0
        %v592 = vadd.f32 0.0, %v591
        %v593 = vpop.f32.mrb[0].mxu0
        %v594 = vpop.f32.mrb[0].mxu0
        %v595 = vadd.f32 0.0, %v594
        %v596 = vpop.f32.mrb[0].mxu0
        %597 = vmatprep.mubr.bf16.mxu0 0
        %598 = vmatmul.mubr.bf16.gmra.mrb[0].mxu0 %v512
        %v599 = vpop.f32.mrb[0].mxu0
        %v600 = vadd.f32 0.0, %v599
        %v601 = vpop.f32.mrb[0].mxu0
        %v602 = vpop.f32.mrb[0].mxu0
        %v603 = vadd.f32 0.0, %v602
        %v604 = vpop.f32.mrb[0].mxu0
        %605 = vmatprep.mubr.bf16.mxu0 0
        %606 = vmatmul.mubr.bf16.gmra.mrb[0].mxu0 %v515
        %v607 = vpop.f32.mrb[0].mxu0
        %v608 = vadd.f32 0.0, %v607
        %v609 = vpop.f32.mrb[0].mxu0
        %v610 = vpop.f32.mrb[0].mxu0
        %v611 = vadd.f32 0.0, %v610
        %v612 = vpop.f32.mrb[0].mxu0
        %613 = vdwg.mxu0
        %v614 = vmul.f32 %v552, %v552
        %v615 = vmul.f32 %v555, %v555
        %v616 = vmul.f32 %v560, %v560
        %v617 = vmul.f32 %v563, %v563
        %v618 = vmul.f32 %v568, %v568
        %v619 = vmul.f32 %v571, %v571
        %v620 = vmul.f32 %v576, %v576
        %v621 = vmul.f32 %v579, %v579
        %v622 = vmul.f32 %v584, %v584
        %v623 = vmul.f32 %v587, %v587
        %v624 = vmul.f32 %v592, %v592
        %v625 = vmul.f32 %v595, %v595
        %v626 = vmul.f32 %v600, %v600
        %v627 = vmul.f32 %v603, %v603
        %v628 = vmul.f32 %v608, %v608
        %v629 = vmul.f32 %v611, %v611
        %v630 = vadd.f32 %v614, %v622
        %v631 = vadd.f32 %v615, %v623
        %v632 = vadd.f32 %v616, %v624
        %v633 = vadd.f32 %v617, %v625
        %v634 = vadd.f32 %v618, %v626
        %v635 = vadd.f32 %v619, %v627
        %v636 = vadd.f32 %v620, %v628
        %v637 = vadd.f32 %v621, %v629
        %v638 = vadd.f32 %v630, 1e-12
        %v639 = vadd.f32 %v631, 1e-12
        %v640 = vadd.f32 %v632, 1e-12
        %v641 = vadd.f32 %v633, 1e-12
        %v642 = vadd.f32 %v634, 1e-12
        %v643 = vadd.f32 %v635, 1e-12
        %v644 = vadd.f32 %v636, 1e-12
        %v645 = vadd.f32 %v637, 1e-12
        %v646 = vrsqrt.pop %v638
        %v647 = vrsqrt.pop %v639
        %v648 = vrsqrt.pop %v640
        %v649 = vrsqrt.pop %v641
        %v650 = vrsqrt.pop %v642
        %v651 = vrsqrt.pop %v643
        %v652 = vrsqrt.pop %v644
        %v653 = vrsqrt.pop %v645
        %v654 = vmul.f32 %v638, %v646
        %v655 = vmul.f32 %v639, %v647
        %v656 = vmul.f32 %v640, %v648
        %v657 = vmul.f32 %v641, %v649
        %v658 = vmul.f32 %v642, %v650
        %v659 = vmul.f32 %v643, %v651
        %v660 = vmul.f32 %v644, %v652
        %v661 = vmul.f32 %v645, %v653
        %v662 = vmul.f32 %v584, %v646
        %v663 = vmul.f32 %v587, %v647
        %v664 = vmul.f32 %v592, %v648
        %v665 = vmul.f32 %v595, %v649
        %v666 = vmul.f32 %v600, %v650
        %v667 = vmul.f32 %v603, %v651
        %v668 = vmul.f32 %v608, %v652
        %v669 = vmul.f32 %v611, %v653
        %v670 = vld [vmem:[%s2] sm:$0x1]
        %v672 = vsel %vm492, %v670, 0
        %674 = vmatprep.subr.mxu0 0.0
        %675 = vmatpush1.msra.mxu0 %v630
        %676 = vmatprep.subr.mxu0 0.0
        %677 = vmatpush1.msra.mxu0 %v631
        %678 = vmatprep.subr.mxu0 0.0
        %679 = vmatpush1.msra.mxu0 %v632
        %680 = vmatprep.subr.mxu0 0.0
        %681 = vmatpush1.msra.mxu0 %v633
        %682 = vmatprep.subr.mxu0 0.0
        %683 = vmatpush1.msra.mxu0 %v634
        %684 = vmatprep.subr.mxu0 0.0
        %685 = vmatpush1.msra.mxu0 %v635
        %686 = vmatprep.subr.mxu0 0.0
        %687 = vmatpush1.msra.mxu0 %v636
        %688 = vmatprep.subr.mxu0 0.0
        %689 = vmatpush1.msra.mxu0 %v637
        %690 = vmatprep.subr.mxu0 0.0
        %691 = vmatpush1.msra.mxu0 0.0
        %692 = vmatprep.subr.mxu0 0.0
        %693 = vmatpush1.msra.mxu0 0.0
        %694 = vmatprep.subr.mxu0 0.0
        %695 = vmatpush1.msra.mxu0 0.0
        %696 = vmatprep.subr.mxu0 0.0
        %697 = vmatpush1.msra.mxu0 0.0
        %698 = vmatprep.subr.mxu0 0.0
        %699 = vmatpush1.msra.mxu0 0.0
        %700 = vmatprep.subr.mxu0 0.0
        %701 = vmatpush1.msra.mxu0 0.0
        %702 = vmatprep.subr.mxu0 0.0
        %703 = vmatpush1.msra.mxu0 0.0
        %704 = vmatprep.subr.mxu0 0.0
        %705 = vmatpush1.msra.mxu0 0.0
        %706 = vmatprep.subr.mxu0 0.0
        %707 = vmatpush1.msra.mxu0 0.0
        %708 = vmatprep.subr.mxu0 0.0
        %709 = vmatpush1.msra.mxu0 0.0
        %710 = vmatprep.subr.mxu0 0.0
        %711 = vmatpush1.msra.mxu0 0.0
        %712 = vmatprep.subr.mxu0 0.0
        %713 = vmatpush1.msra.mxu0 0.0
        %714 = vmatprep.subr.mxu0 0.0
        %715 = vmatpush1.msra.mxu0 0.0
        %716 = vmatprep.subr.mxu0 0.0
        %717 = vmatpush1.msra.mxu0 0.0
        %718 = vmatprep.subr.mxu0 0.0
        %719 = vmatpush1.msra.mxu0 0.0
        %720 = vmatprep.subr.mxu0 0.0
        %721 = vmatpush1.msra.mxu0 0.0
        %722 = vmatprep.subr.mxu0 0.0
        %723 = vmatpush1.msra.mxu0 0.0
        %724 = vmatprep.subr.mxu0 0.0
        %725 = vmatpush1.msra.mxu0 0.0
        %726 = vmatprep.subr.mxu0 0.0
        %727 = vmatpush1.msra.mxu0 0.0
        %728 = vmatprep.subr.mxu0 0.0
        %729 = vmatpush1.msra.mxu0 0.0
        %730 = vmatprep.subr.mxu0 0.0
        %731 = vmatpush1.msra.mxu0 0.0
        %732 = vmatprep.subr.mxu0 0.0
        %733 = vmatpush1.msra.mxu0 0.0
        %734 = vmatprep.subr.mxu0 0.0
        %735 = vmatpush1.msra.mxu0 0.0
        %736 = vmatprep.subr.mxu0 0.0
        %737 = vmatpush1.msra.mxu0 0.0
        %738 = vmatprep.mubr.f32.mxu0 0.0
        %739 = vmatmul.mubr.f32.gmra.mrb[0].mxu0 %v672
        %v740 = vpop.f32.mrb[0].mxu0
        %v741 = vadd.f32 0.0, %v740
        %v742 = vpop.f32.mrb[0].mxu0
        %743 = vdwg.mxu0
        %v744 = vld [vmem:[%s3] sm:$0x1]
        %v746 = vsel %vm492, %v744, 0
        %748 = vmatprep.subr.mxu0 %v654
        %749 = vmatpush1.msra.mxu0 %v662
        %750 = vmatprep.subr.mxu0 %v655
        %751 = vmatpush1.msra.mxu0 %v663
        %752 = vmatprep.subr.mxu0 %v656
        %753 = vmatpush1.msra.mxu0 %v664
        %754 = vmatprep.subr.mxu0 %v657
        %755 = vmatpush1.msra.mxu0 %v665
        %756 = vmatprep.subr.mxu0 %v658
        %757 = vmatpush1.msra.mxu0 %v666
        %758 = vmatprep.subr.mxu0 %v659
        %759 = vmatpush1.msra.mxu0 %v667
        %760 = vmatprep.subr.mxu0 %v660
        %761 = vmatpush1.msra.mxu0 %v668
        %762 = vmatprep.subr.mxu0 %v661
        %763 = vmatpush1.msra.mxu0 %v669
        %764 = vmatprep.subr.mxu0 0.0
        %765 = vmatpush1.msra.mxu0 0.0
        %766 = vmatprep.subr.mxu0 0.0
        %767 = vmatpush1.msra.mxu0 0.0
        %768 = vmatprep.subr.mxu0 0.0
        %769 = vmatpush1.msra.mxu0 0.0
        %770 = vmatprep.subr.mxu0 0.0
        %771 = vmatpush1.msra.mxu0 0.0
        %772 = vmatprep.subr.mxu0 0.0
        %773 = vmatpush1.msra.mxu0 0.0
        %774 = vmatprep.subr.mxu0 0.0
        %775 = vmatpush1.msra.mxu0 0.0
        %776 = vmatprep.subr.mxu0 0.0
        %777 = vmatpush1.msra.mxu0 0.0
        %778 = vmatprep.subr.mxu0 0.0
        %779 = vmatpush1.msra.mxu0 0.0
        %780 = vmatprep.subr.mxu0 0.0
        %781 = vmatpush1.msra.mxu0 0.0
        %782 = vmatprep.subr.mxu0 0.0
        %783 = vmatpush1.msra.mxu0 0.0
        %784 = vmatprep.subr.mxu0 0.0
        %785 = vmatpush1.msra.mxu0 0.0
        %786 = vmatprep.subr.mxu0 0.0
        %787 = vmatpush1.msra.mxu0 0.0
        %788 = vmatprep.subr.mxu0 0.0
        %789 = vmatpush1.msra.mxu0 0.0
        %790 = vmatprep.subr.mxu0 0.0
        %791 = vmatpush1.msra.mxu0 0.0
        %792 = vmatprep.subr.mxu0 0.0
        %793 = vmatpush1.msra.mxu0 0.0
        %794 = vmatprep.subr.mxu0 0.0
        %795 = vmatpush1.msra.mxu0 0.0
        %796 = vmatprep.subr.mxu0 0.0
        %797 = vmatpush1.msra.mxu0 0.0
        %798 = vmatprep.subr.mxu0 0.0
        %799 = vmatpush1.msra.mxu0 0.0
        %800 = vmatprep.subr.mxu0 0.0
        %801 = vmatpush1.msra.mxu0 0.0
        %802 = vmatprep.subr.mxu0 0.0
        %803 = vmatpush1.msra.mxu0 0.0
        %804 = vmatprep.subr.mxu0 0.0
        %805 = vmatpush1.msra.mxu0 0.0
        %806 = vmatprep.subr.mxu0 0.0
        %807 = vmatpush1.msra.mxu0 0.0
        %808 = vmatprep.subr.mxu0 0.0
        %809 = vmatpush1.msra.mxu0 0.0
        %810 = vmatprep.subr.mxu0 0.0
        %811 = vmatpush1.msra.mxu0 0.0
        %812 = vmatprep.mubr.f32.mxu0 0.0
        %813 = vmatmul.mubr.f32.gmra.mrb[0].mxu0 %v746
        %v814 = vpop.f32.mrb[0].mxu0
        %v815 = vadd.f32 0.0, %v814
        %v816 = vpop.f32.mrb[0].mxu0
        %v817 = vadd.f32 0.0, %v816
        %818 = vdwg.mxu0
        %v819 = vld [vmem:[%s4] sm:$0xff]
        %v820 = vld [vmem:[%s4 + $0x8] sm:$0xff]
        %v821 = vld [vmem:[%s4 + $0x10] sm:$0xff]
        %v822 = vld [vmem:[%s4 + $0x18] sm:$0xff]
        %v823 = vld [vmem:[%s4 + $0x20] sm:$0xff]
        %v824 = vld [vmem:[%s4 + $0x28] sm:$0xff]
        %v825 = vld [vmem:[%s4 + $0x30] sm:$0xff]
        %v826 = vld [vmem:[%s4 + $0x38] sm:$0xff]
        %v827 = vld [vmem:[%s4 + $0x40] sm:$0xff]
        %v828 = vld [vmem:[%s4 + $0x48] sm:$0xff]
        %v829 = vld [vmem:[%s4 + $0x50] sm:$0xff]
        %v830 = vld [vmem:[%s4 + $0x58] sm:$0xff]
        %v831 = vlaneseq
        %v832 = vshrl.u32 %v831, 7
        %v833 = vsub.s32 0, %v832
        %v834 = vrot.slane %v741, %v833
        %v835 = vlaneseq
        %v836 = vshrl.u32 %v835, 7
        %v837 = vsub.s32 0, %v836
        %v838 = vrot.slane %v815, %v837
        %v839 = vlaneseq
        %v840 = vshrl.u32 %v839, 7
        %v841 = vsub.s32 0, %v840
        %v842 = vrot.slane %v817, %v841
        %v843 = vmul.f32 %v834, %v819
        %v844 = vmul.f32 %v838, %v820
        %v845 = vmul.f32 %v842, %v821
        %v846 = vmul.f32 %v834, %v822
        %v847 = vmul.f32 %v838, %v823
        %v848 = vmul.f32 %v842, %v824
        %v849 = vmul.f32 %v834, %v825
        %v850 = vmul.f32 %v838, %v826
        %v851 = vmul.f32 %v842, %v827
        %v852 = vmul.f32 %v834, %v828
        %v853 = vmul.f32 %v838, %v829
        %v854 = vmul.f32 %v842, %v830
        %v855 = vld [vmem:[%s5] sm:$0xff]
        %v856 = vld [vmem:[%s5 + $0x8] sm:$0xff]
        %v857 = vld [vmem:[%s5 + $0x10] sm:$0xff]
        %v858 = vld [vmem:[%s5 + $0x18] sm:$0xff]
        %v859 = vld [vmem:[%s5 + $0x20] sm:$0xff]
        %v860 = vld [vmem:[%s5 + $0x28] sm:$0xff]
        %v861 = vld [vmem:[%s5 + $0x30] sm:$0xff]
        %v862 = vld [vmem:[%s5 + $0x38] sm:$0xff]
        %v863 = vld [vmem:[%s5 + $0x40] sm:$0xff]
        %v864 = vld [vmem:[%s5 + $0x48] sm:$0xff]
        %v865 = vld [vmem:[%s5 + $0x50] sm:$0xff]
        %v866 = vld [vmem:[%s5 + $0x58] sm:$0xff]
        %v867 = vld [vmem:[%s5 + $0x60] sm:$0xff]
        %v868 = vld [vmem:[%s5 + $0x68] sm:$0xff]
        %v869 = vld [vmem:[%s5 + $0x70] sm:$0xff]
        %v870 = vld [vmem:[%s5 + $0x78] sm:$0xff]
        %v871 = vld [vmem:[%s5 + $0x80] sm:$0xff]
        %v872 = vld [vmem:[%s5 + $0x88] sm:$0xff]
        %v873 = vld [vmem:[%s5 + $0x90] sm:$0xff]
        %v874 = vld [vmem:[%s5 + $0x98] sm:$0xff]
        %v875 = vld [vmem:[%s5 + $0xa0] sm:$0xff]
        %v876 = vld [vmem:[%s5 + $0xa8] sm:$0xff]
        %v877 = vld [vmem:[%s5 + $0xb0] sm:$0xff]
        %v878 = vld [vmem:[%s5 + $0xb8] sm:$0xff]
        %v879 = vld [vmem:[%s5 + $0xc0] sm:$0xff]
        %v880 = vld [vmem:[%s5 + $0xc8] sm:$0xff]
        %v881 = vld [vmem:[%s5 + $0xd0] sm:$0xff]
        %v882 = vld [vmem:[%s5 + $0xd8] sm:$0xff]
        %v883 = vld [vmem:[%s5 + $0xe0] sm:$0xff]
        %v884 = vld [vmem:[%s5 + $0xe8] sm:$0xff]
        %v885 = vld [vmem:[%s5 + $0xf0] sm:$0xff]
        %v886 = vld [vmem:[%s5 + $0xf8] sm:$0xff]
        %v887 = vld [vmem:[%s5 + $0x100] sm:$0xff]
        %v888 = vld [vmem:[%s5 + $0x108] sm:$0xff]
        %v889 = vld [vmem:[%s5 + $0x110] sm:$0xff]
        %v890 = vld [vmem:[%s5 + $0x118] sm:$0xff]
        %v891 = vld [vmem:[%s5 + $0x120] sm:$0xff]
        %v892 = vld [vmem:[%s5 + $0x128] sm:$0xff]
        %v893 = vld [vmem:[%s5 + $0x130] sm:$0xff]
        %v894 = vld [vmem:[%s5 + $0x138] sm:$0xff]
        %v895 = vld [vmem:[%s5 + $0x140] sm:$0xff]
        %v896 = vld [vmem:[%s5 + $0x148] sm:$0xff]
        %v897 = vld [vmem:[%s5 + $0x150] sm:$0xff]
        %v898 = vld [vmem:[%s5 + $0x158] sm:$0xff]
        %v899 = vld [vmem:[%s5 + $0x160] sm:$0xff]
        %v900 = vld [vmem:[%s5 + $0x168] sm:$0xff]
        %v901 = vld [vmem:[%s5 + $0x170] sm:$0xff]
        %v902 = vld [vmem:[%s5 + $0x178] sm:$0xff]
        %v903 = vld [vmem:[%s6] sm:$0x1]
        %v905 = vlaneseq
        %v906 = vshrl.u32 %v905, 7
        %v907 = vsub.s32 0, %v906
        %v908 = vrot.slane %v903, %v907
        %910 = vmatprep.subr.mxu0 0.0
        %911 = vmatpush1.msra.mxu0 %v855
        %912 = vmatprep.subr.mxu0 0.0
        %913 = vmatpush1.msra.mxu0 %v856
        %914 = vmatprep.subr.mxu0 0.0
        %915 = vmatpush1.msra.mxu0 %v857
        %916 = vmatprep.subr.mxu0 0.0
        %917 = vmatpush1.msra.mxu0 %v858
        %918 = vmatprep.subr.mxu0 0.0
        %919 = vmatpush1.msra.mxu0 %v859
        %920 = vmatprep.subr.mxu0 0.0
        %921 = vmatpush1.msra.mxu0 %v860
        %922 = vmatprep.subr.mxu0 0.0
        %923 = vmatpush1.msra.mxu0 %v861
        %924 = vmatprep.subr.mxu0 0.0
        %925 = vmatpush1.msra.mxu0 %v862
        %926 = vmatprep.subr.mxu0 0.0
        %927 = vmatpush1.msra.mxu0 %v863
        %928 = vmatprep.subr.mxu0 0.0
        %929 = vmatpush1.msra.mxu0 %v864
        %930 = vmatprep.subr.mxu0 0.0
        %931 = vmatpush1.msra.mxu0 %v865
        %932 = vmatprep.subr.mxu0 0.0
        %933 = vmatpush1.msra.mxu0 %v866
        %934 = vmatprep.subr.mxu0 0.0
        %935 = vmatpush1.msra.mxu0 %v867
        %936 = vmatprep.subr.mxu0 0.0
        %937 = vmatpush1.msra.mxu0 %v868
        %938 = vmatprep.subr.mxu0 0.0
        %939 = vmatpush1.msra.mxu0 %v869
        %940 = vmatprep.subr.mxu0 0.0
        %941 = vmatpush1.msra.mxu0 %v870
        %942 = vmatprep.subr.mxu0 0.0
        %943 = vmatpush1.msra.mxu0 %v871
        %944 = vmatprep.subr.mxu0 0.0
        %945 = vmatpush1.msra.mxu0 %v872
        %946 = vmatprep.subr.mxu0 0.0
        %947 = vmatpush1.msra.mxu0 %v873
        %948 = vmatprep.subr.mxu0 0.0
        %949 = vmatpush1.msra.mxu0 %v874
        %950 = vmatprep.subr.mxu0 0.0
        %951 = vmatpush1.msra.mxu0 %v875
        %952 = vmatprep.subr.mxu0 0.0
        %953 = vmatpush1.msra.mxu0 %v876
        %954 = vmatprep.subr.mxu0 0.0
        %955 = vmatpush1.msra.mxu0 %v877
        %956 = vmatprep.subr.mxu0 0.0
        %957 = vmatpush1.msra.mxu0 %v878
        %958 = vmatprep.subr.mxu0 0.0
        %959 = vmatpush1.msra.mxu0 %v879
        %960 = vmatprep.subr.mxu0 0.0
        %961 = vmatpush1.msra.mxu0 %v880
        %962 = vmatprep.subr.mxu0 0.0
        %963 = vmatpush1.msra.mxu0 %v881
        %964 = vmatprep.subr.mxu0 0.0
        %965 = vmatpush1.msra.mxu0 %v882
        %966 = vmatprep.subr.mxu0 0.0
        %967 = vmatpush1.msra.mxu0 %v883
        %968 = vmatprep.subr.mxu0 0.0
        %969 = vmatpush1.msra.mxu0 %v884
        %970 = vmatprep.subr.mxu0 0.0
        %971 = vmatpush1.msra.mxu0 %v885
        %972 = vmatprep.subr.mxu0 0.0
        %973 = vmatpush1.msra.mxu0 %v886
        %974 = vmatprep.mubr.f32.mxu0 %v844
        %975 = vmatmul.mubr.f32.gmra.mrb[0].mxu0 %v843
        %v976 = vpop.f32.mrb[0].mxu0
        %v977 = vadd.f32 %v908, %v976
        %v978 = vpop.f32.mrb[0].mxu0
        %979 = vmatprep.mubr.f32.mxu0 %v847
        %980 = vmatmul.mubr.f32.gmra.mrb[0].mxu0 %v846
        %v981 = vpop.f32.mrb[0].mxu0
        %v982 = vadd.f32 %v908, %v981
        %v983 = vpop.f32.mrb[0].mxu0
        %984 = vmatprep.mubr.f32.mxu0 %v850
        %985 = vmatmul.mubr.f32.gmra.mrb[0].mxu0 %v849
        %v986 = vpop.f32.mrb[0].mxu0
        %v987 = vadd.f32 %v908, %v986
        %v988 = vpop.f32.mrb[0].mxu0
        %989 = vmatprep.mubr.f32.mxu0 %v853
        %990 = vmatmul.mubr.f32.gmra.mrb[0].mxu0 %v852
        %v991 = vpop.f32.mrb[0].mxu0
        %v992 = vadd.f32 %v908, %v991
        %v993 = vpop.f32.mrb[0].mxu0
        %994 = vdwg.mxu0
        %995 = vmatprep.subr.mxu0 0.0
        %996 = vmatpush1.msra.mxu0 %v887
        %997 = vmatprep.subr.mxu0 0.0
        %998 = vmatpush1.msra.mxu0 %v888
        %999 = vmatprep.subr.mxu0 0.0
        %1000 = vmatpush1.msra.mxu0 %v889
        %1001 = vmatprep.subr.mxu0 0.0
        %1002 = vmatpush1.msra.mxu0 %v890
        %1003 = vmatprep.subr.mxu0 0.0
        %1004 = vmatpush1.msra.mxu0 %v891
        %1005 = vmatprep.subr.mxu0 0.0
        %1006 = vmatpush1.msra.mxu0 %v892
        %1007 = vmatprep.subr.mxu0 0.0
        %1008 = vmatpush1.msra.mxu0 %v893
        %1009 = vmatprep.subr.mxu0 0.0
        %1010 = vmatpush1.msra.mxu0 %v894
        %1011 = vmatprep.subr.mxu0 0.0
        %1012 = vmatpush1.msra.mxu0 %v895
        %1013 = vmatprep.subr.mxu0 0.0
        %1014 = vmatpush1.msra.mxu0 %v896
        %1015 = vmatprep.subr.mxu0 0.0
        %1016 = vmatpush1.msra.mxu0 %v897
        %1017 = vmatprep.subr.mxu0 0.0
        %1018 = vmatpush1.msra.mxu0 %v898
        %1019 = vmatprep.subr.mxu0 0.0
        %1020 = vmatpush1.msra.mxu0 %v899
        %1021 = vmatprep.subr.mxu0 0.0
        %1022 = vmatpush1.msra.mxu0 %v900
        %1023 = vmatprep.subr.mxu0 0.0
        %1024 = vmatpush1.msra.mxu0 %v901
        %1025 = vmatprep.subr.mxu0 0.0
        %1026 = vmatpush1.msra.mxu0 %v902
        %1027 = vmatprep.subr.mxu0 0.0
        %1028 = vmatpush1.msra.mxu0 0.0
        %1029 = vmatprep.subr.mxu0 0.0
        %1030 = vmatpush1.msra.mxu0 0.0
        %1031 = vmatprep.subr.mxu0 0.0
        %1032 = vmatpush1.msra.mxu0 0.0
        %1033 = vmatprep.subr.mxu0 0.0
        %1034 = vmatpush1.msra.mxu0 0.0
        %1035 = vmatprep.subr.mxu0 0.0
        %1036 = vmatpush1.msra.mxu0 0.0
        %1037 = vmatprep.subr.mxu0 0.0
        %1038 = vmatpush1.msra.mxu0 0.0
        %1039 = vmatprep.subr.mxu0 0.0
        %1040 = vmatpush1.msra.mxu0 0.0
        %1041 = vmatprep.subr.mxu0 0.0
        %1042 = vmatpush1.msra.mxu0 0.0
        %1043 = vmatprep.subr.mxu0 0.0
        %1044 = vmatpush1.msra.mxu0 0.0
        %1045 = vmatprep.subr.mxu0 0.0
        %1046 = vmatpush1.msra.mxu0 0.0
        %1047 = vmatprep.subr.mxu0 0.0
        %1048 = vmatpush1.msra.mxu0 0.0
        %1049 = vmatprep.subr.mxu0 0.0
        %1050 = vmatpush1.msra.mxu0 0.0
        %1051 = vmatprep.subr.mxu0 0.0
        %1052 = vmatpush1.msra.mxu0 0.0
        %1053 = vmatprep.subr.mxu0 0.0
        %1054 = vmatpush1.msra.mxu0 0.0
        %1055 = vmatprep.subr.mxu0 0.0
        %1056 = vmatpush1.msra.mxu0 0.0
        %1057 = vmatprep.subr.mxu0 0.0
        %1058 = vmatpush1.msra.mxu0 0.0
        %1059 = vmatprep.mubr.f32.mxu0 0.0
        %1060 = vmatmul.mubr.f32.gmra.mrb[0].mxu0 %v845
        %v1061 = vpop.f32.mrb[0].mxu0
        %v1062 = vadd.f32 %v977, %v1061
        %v1063 = vpop.f32.mrb[0].mxu0
        %1064 = vmatprep.mubr.f32.mxu0 0.0
        %1065 = vmatmul.mubr.f32.gmra.mrb[0].mxu0 %v848
        %v1066 = vpop.f32.mrb[0].mxu0
        %v1067 = vadd.f32 %v982, %v1066
        %v1068 = vpop.f32.mrb[0].mxu0
        %1069 = vmatprep.mubr.f32.mxu0 0.0
        %1070 = vmatmul.mubr.f32.gmra.mrb[0].mxu0 %v851
        %v1071 = vpop.f32.mrb[0].mxu0
        %v1072 = vadd.f32 %v987, %v1071
        %v1073 = vpop.f32.mrb[0].mxu0
        %1074 = vmatprep.mubr.f32.mxu0 0.0
        %1075 = vmatmul.mubr.f32.gmra.mrb[0].mxu0 %v854
        %v1076 = vpop.f32.mrb[0].mxu0
        %v1077 = vadd.f32 %v992, %v1076
        %v1078 = vpop.f32.mrb[0].mxu0
        %1079 = vdwg.mxu0
        %v1080 = vmax.f32 %v1062, 0.0
        %v1081 = vmax.f32 %v1067, 0.0
        %v1082 = vmax.f32 %v1072, 0.0
        %v1083 = vmax.f32 %v1077, 0.0
        %v1084 = vld [vmem:[%s7] sm:$0xff]
        %v1085 = vld [vmem:[%s7 + $0x8] sm:$0xff]
        %v1086 = vld [vmem:[%s7 + $0x10] sm:$0xff]
        %v1087 = vld [vmem:[%s8] sm:$0x1]
        %v1089 = vlaneseq
        %v1090 = vshrl.u32 %v1089, 7
        %v1091 = vsub.s32 0, %v1090
        %v1092 = vrot.slane %v1087, %v1091
        %vm1094 = vcmask 195584
        %v1096 = vsel %vm1094, %v1080, 0
        %v1099 = vsel %vm1094, %v1081, 0
        %v1102 = vsel %vm1094, %v1082, 0
        %v1105 = vsel %vm1094, %v1083, 0
        %1107 = vmatprep.subr.mxu0 0.0
        %1108 = vmatpush1.msra.mxu0 %v1084
        %1109 = vmatprep.subr.mxu0 0.0
        %1110 = vmatpush1.msra.mxu0 %v1085
        %1111 = vmatprep.subr.mxu0 0.0
        %1112 = vmatpush1.msra.mxu0 %v1086
        %1113 = vmatprep.subr.mxu0 0.0
        %1114 = vmatpush1.msra.mxu0 0.0
        %1115 = vmatprep.subr.mxu0 0.0
        %1116 = vmatpush1.msra.mxu0 0.0
        %1117 = vmatprep.subr.mxu0 0.0
        %1118 = vmatpush1.msra.mxu0 0.0
        %1119 = vmatprep.subr.mxu0 0.0
        %1120 = vmatpush1.msra.mxu0 0.0
        %1121 = vmatprep.subr.mxu0 0.0
        %1122 = vmatpush1.msra.mxu0 0.0
        %1123 = vmatprep.subr.mxu0 0.0
        %1124 = vmatpush1.msra.mxu0 0.0
        %1125 = vmatprep.subr.mxu0 0.0
        %1126 = vmatpush1.msra.mxu0 0.0
        %1127 = vmatprep.subr.mxu0 0.0
        %1128 = vmatpush1.msra.mxu0 0.0
        %1129 = vmatprep.subr.mxu0 0.0
        %1130 = vmatpush1.msra.mxu0 0.0
        %1131 = vmatprep.subr.mxu0 0.0
        %1132 = vmatpush1.msra.mxu0 0.0
        %1133 = vmatprep.subr.mxu0 0.0
        %1134 = vmatpush1.msra.mxu0 0.0
        %1135 = vmatprep.subr.mxu0 0.0
        %1136 = vmatpush1.msra.mxu0 0.0
        %1137 = vmatprep.subr.mxu0 0.0
        %1138 = vmatpush1.msra.mxu0 0.0
        %1139 = vmatprep.subr.mxu0 0.0
        %1140 = vmatpush1.msra.mxu0 0.0
        %1141 = vmatprep.subr.mxu0 0.0
        %1142 = vmatpush1.msra.mxu0 0.0
        %1143 = vmatprep.subr.mxu0 0.0
        %1144 = vmatpush1.msra.mxu0 0.0
        %1145 = vmatprep.subr.mxu0 0.0
        %1146 = vmatpush1.msra.mxu0 0.0
        %1147 = vmatprep.subr.mxu0 0.0
        %1148 = vmatpush1.msra.mxu0 0.0
        %1149 = vmatprep.subr.mxu0 0.0
        %1150 = vmatpush1.msra.mxu0 0.0
        %1151 = vmatprep.subr.mxu0 0.0
        %1152 = vmatpush1.msra.mxu0 0.0
        %1153 = vmatprep.subr.mxu0 0.0
        %1154 = vmatpush1.msra.mxu0 0.0
        %1155 = vmatprep.subr.mxu0 0.0
        %1156 = vmatpush1.msra.mxu0 0.0
        %1157 = vmatprep.subr.mxu0 0.0
        %1158 = vmatpush1.msra.mxu0 0.0
        %1159 = vmatprep.subr.mxu0 0.0
        %1160 = vmatpush1.msra.mxu0 0.0
        %1161 = vmatprep.subr.mxu0 0.0
        %1162 = vmatpush1.msra.mxu0 0.0
        %1163 = vmatprep.subr.mxu0 0.0
        %1164 = vmatpush1.msra.mxu0 0.0
        %1165 = vmatprep.subr.mxu0 0.0
        %1166 = vmatpush1.msra.mxu0 0.0
        %1167 = vmatprep.subr.mxu0 0.0
        %1168 = vmatpush1.msra.mxu0 0.0
        %1169 = vmatprep.subr.mxu0 0.0
        %1170 = vmatpush1.msra.mxu0 0.0
        %1171 = vmatprep.mubr.f32.mxu0 0.0
        %1172 = vmatmul.mubr.f32.gmra.mrb[0].mxu0 %v1096
        %v1173 = vpop.f32.mrb[0].mxu0
        %v1174 = vadd.f32 %v1092, %v1173
        %v1175 = vpop.f32.mrb[0].mxu0
        %1176 = vmatprep.mubr.f32.mxu0 0.0
        %1177 = vmatmul.mubr.f32.gmra.mrb[0].mxu0 %v1099
        %v1178 = vpop.f32.mrb[0].mxu0
        %v1179 = vadd.f32 %v1092, %v1178
        %v1180 = vpop.f32.mrb[0].mxu0
        %1181 = vmatprep.mubr.f32.mxu0 0.0
        %1182 = vmatmul.mubr.f32.gmra.mrb[0].mxu0 %v1102
        %v1183 = vpop.f32.mrb[0].mxu0
        %v1184 = vadd.f32 %v1092, %v1183
        %v1185 = vpop.f32.mrb[0].mxu0
        %1186 = vmatprep.mubr.f32.mxu0 0.0
        %1187 = vmatmul.mubr.f32.gmra.mrb[0].mxu0 %v1105
        %v1188 = vpop.f32.mrb[0].mxu0
        %v1189 = vadd.f32 %v1092, %v1188
        %v1190 = vpop.f32.mrb[0].mxu0
        %1191 = vdwg.mxu0
        %v1192 = vmax.f32 %v1174, 0.0
        %v1193 = vmax.f32 %v1179, 0.0
        %v1194 = vmax.f32 %v1184, 0.0
        %v1195 = vmax.f32 %v1189, 0.0
        %vm1196 = vcmask 130048
        %1197 = vst.msk [vmem:[%s401] sm:$0xff] %vm1196, %v1192
        %1198 = vst.msk [vmem:[%s401 + $0x8] sm:$0xff] %vm1196, %v1193
        %1199 = vst.msk [vmem:[%s401 + $0x10] sm:$0xff] %vm1196, %v1194
        %1200 = vst.msk [vmem:[%s401 + $0x18] sm:$0xff] %vm1196, %v1195
        %s1201 = smul.u32 4, %s20
        %p1202 = scmp.lt.s32.totalorder %s1201, 7
        %s1203 = scalar_select %p1202, %s1201, 7
        %s1204 = smul.addr %s1203, 8
        %s1205 = scalar_lea.vmem %s9, %s1204
        // Predicated region
        $region98: #{frequency_feature_extractor.1} parent=92 // pred_check
          %p1206 = pneg %p232
        $region99: #{frequency_feature_extractor.1} parent=92 // pred_check_branch
          %1208 = sbr.rel (%p1206) target = $region101
        $region100: #{frequency_feature_extractor.1} parent=92 // pred_region
          %s1209 = smul.u32 4, %s20
        $region101: #{frequency_feature_extractor.1} parent=92 // pred_fallthru
          _
      $region93: #{frequency_feature_extractor.1} parent=5 // pred_fallthru
        _
      %p1210 = scmp.le.s32.totalorder 2, %s15
      // Predicated region
      $region102: #{frequency_feature_extractor.1} parent=5 // pred_check
        %p1211 = pneg %p1210
      $region103: #{frequency_feature_extractor.1} parent=5 // pred_check_branch
        %1213 = sbr.rel (%p1211) target = $region105
      $region104: #{frequency_feature_extractor.1} parent=5 // pred_region
        %s1214 = ssub.s32 %s15, 2
        // Predicated region
        $region106: #{frequency_feature_extractor.1} parent=104 // pred_check
          %p1215 = pneg %p238
        $region107: #{frequency_feature_extractor.1} parent=104 // pred_check_branch
          %1217 = sbr.rel (%p1215) target = $region109
        $region108: #{frequency_feature_extractor.1} parent=104 // pred_region
          %s1218 = smul.u32 4, %s21
          %p1219 = scmp.lt.s32.totalorder %s1218, 7
          %s1220 = scalar_select %p1219, %s1218, 7
          %s1221 = smul.addr %s1220, 8
          %s1222 = scalar_lea.vmem %s9, %s1221
        $region109: #{frequency_feature_extractor.1} parent=104 // pred_fallthru
          _
      $region105: #{frequency_feature_extractor.1} parent=5 // pred_fallthru
        _
    $region6: #{frequency_feature_extractor.1} parent=1 // loop_footer
      %s19 = sadd.s32 1, %s15
    $region7: #{frequency_feature_extractor.1} parent=1 // loop_footer_branch
      %14 = sbr.rel target = $region3
    $region8: #{frequency_feature_extractor.1} parent=1 // loop_exit
      _

</llo_original>
